<compile_context>
chip_gen: v7x
topology: tpu7x:2x2x1
jax: 0.10.0
libtpu: 0.0.40
codegen_flags: <defaults>
</compile_context>

<pallas_src>
import functools

import jax
import jax.numpy as jnp
from jax.experimental import pallas as pl
from jax.experimental.pallas import tpu as pltpu


def _round_up(n, m):
    return ((n + m - 1) // m) * m


def _supports_bf16_vpu():
    """bf16 VALU exists on v6e and later; v2-v5 do the epilogue in f32."""
    try:
        kind = jax.devices()[0].device_kind.lower()
    except Exception:
        return False
    return not any(tag in kind for tag in ("v2", "v3", "v4", "v5"))


def mlp_kernel(x_ref, w1_ref, b1_ref, w2_ref, b2_ref, o_ref, *, bf16_epilogue):
    # x arrives in f32; cast to bf16 in-kernel (VPU slack under the MXU) instead of a
    # separate wrapper-side XLA pass over the activations.
    x = x_ref[...].astype(jnp.bfloat16)
    # fc1 on the MXU: bf16 operands, f32 accumulation.
    h = jnp.dot(x, w1_ref[...], preferred_element_type=jnp.float32)
    if bf16_epilogue:
        # v6e/v7x: native bf16 VALU -> bias + ReLU in bf16; result is already bf16 for fc2.
        hb = jnp.maximum(h.astype(jnp.bfloat16) + b1_ref[...].astype(jnp.bfloat16), 0)
    else:
        # v5e: no bf16 VPU path -> keep the epilogue in f32, cast once for the second MXU pass.
        hb = jnp.maximum(h + b1_ref[...], 0.0).astype(jnp.bfloat16)
    # fc2 on the MXU: bf16 operands, f32 accumulation; bias add in f32, store bf16.
    o = jnp.dot(hb, w2_ref[...], preferred_element_type=jnp.float32)
    o_ref[...] = (o + b2_ref[...]).astype(o_ref.dtype)


def nn_forward(x, w1, b1, w2, b2, num_classes, *, batch_tile=512,
               bf16_epilogue=None, return_padded=False):
    """Fused MLP forward: relu(x @ w1 + b1) @ w2 + b2.

    x:  (B, D) float32
    w1: (D, Hp) bfloat16   (Hp = hidden padded to a multiple of 128, pad cols zero)
    b1: (1, Hp) float32    (pad entries zero)
    w2: (Hp, Cp) bfloat16  (Cp = num_classes padded to 128, pad rows/cols zero)
    b2: (1, Cp) float32    (pad entries zero)
    Returns (B, num_classes) float32, or the raw (Bp, Cp) bf16 slab if return_padded=True.
    """
    B, D = x.shape
    Hp = w1.shape[1]
    Cp = w2.shape[1]

    if bf16_epilogue is None:
        bf16_epilogue = _supports_bf16_vpu()

    # Batch tile selection: 512-row tiles at large batch; for moderate batches shrink the tile
    # so the grid has >= 2 steps (feeds both v7x TensorCores; neutral on v5e/v6e). Tiles are
    # 16-row multiples so the bf16 output slab stays sublane-pack aligned.
    batch_tile = max(16, _round_up(batch_tile, 16))
    if B >= 2 * batch_tile:
        tm = batch_tile
    else:
        half = _round_up(max((B + 1) // 2, 1), 16)
        tm = half if half < B else _round_up(max(B, 1), 16)
    Bp = _round_up(B, tm)
    if Bp != B:
        # Single pad pass, only when the batch is ragged (the bf16 cast now happens in-kernel).
        x = jnp.pad(x, ((0, Bp - B), (0, 0)))

    kernel = functools.partial(mlp_kernel, bf16_epilogue=bf16_epilogue)
    out = pl.pallas_call(
        kernel,
        out_shape=jax.ShapeDtypeStruct((Bp, Cp), jnp.bfloat16),
        grid=(Bp // tm,),
        in_specs=[
            pl.BlockSpec((tm, D), lambda i: (i, 0)),   # f32 x tile marches over batch
            pl.BlockSpec((D, Hp), lambda i: (0, 0)),   # W1 resident across grid steps
            pl.BlockSpec((1, Hp), lambda i: (0, 0)),   # b1 resident
            pl.BlockSpec((Hp, Cp), lambda i: (0, 0)),  # W2 resident
            pl.BlockSpec((1, Cp), lambda i: (0, 0)),   # b2 resident
        ],
        out_specs=pl.BlockSpec((tm, Cp), lambda i: (i, 0)),  # lane-dense (Cp = 128) bf16 store
        compiler_params=pltpu.CompilerParams(
            dimension_semantics=("parallel",)),        # shard batch tiles across v7x's 2 TCs
    )(x, w1, b1, w2, b2)

    if return_padded:
        return out  # (Bp, Cp) bf16 slab — no extra HBM pass for slicing/casting
    return out[:B, :num_classes].astype(jnp.float32)


def init_linear_params(key, in_features, out_features, *, pad_in=None, pad_out=None):
    """Mimics PyTorch nn.Linear default init U(-k, k), k = 1/sqrt(fan_in).

    Returns weight as (pad_in, pad_out) bfloat16 (PyTorch weight transposed, zero-padded)
    and bias as (1, pad_out) float32 (zero-padded)."""
    pad_in = in_features if pad_in is None else pad_in
    pad_out = out_features if pad_out is None else pad_out
    kw, kb = jax.random.split(key)
    k = 1.0 / float(in_features) ** 0.5
    w = jax.random.uniform(kw, (in_features, out_features), jnp.float32, minval=-k, maxval=k)
    b = jax.random.uniform(kb, (1, out_features), jnp.float32, minval=-k, maxval=k)
    w = jnp.pad(w, ((0, pad_in - in_features), (0, pad_out - out_features)))
    b = jnp.pad(b, ((0, 0), (0, pad_out - out_features)))
    return w.astype(jnp.bfloat16), b


if __name__ == "__main__":
    # Small shapes consistent with the module's forward.
    batch = 8
    input_size = 64        # constructor arg
    hidden = 1000          # hardcoded fc1 output width in the module
    num_classes = 10       # constructor arg

    hidden_p = _round_up(hidden, 128)        # 1024: lane-aligned hidden dim
    classes_p = _round_up(num_classes, 128)  # 128: lane-dense output slab

    root = jax.random.PRNGKey(0)
    kx, k1, k2 = jax.random.split(root, 3)

    x = jax.random.normal(kx, (batch, input_size), jnp.float32)
    w1, b1 = init_linear_params(k1, input_size, hidden, pad_out=hidden_p)
    w2, b2 = init_linear_params(k2, hidden, num_classes, pad_in=hidden_p, pad_out=classes_p)

    bf16_epi = _supports_bf16_vpu()
    out = nn_forward(x, w1, b1, w2, b2, num_classes, bf16_epilogue=bf16_epi)
    out = jax.block_until_ready(out)

    # Pure-JAX reference mirroring the kernel's numerics (bf16 MXU operands, f32 accumulation,
    # generation-gated epilogue precision, bf16 output store).
    hp = jax.lax.Precision.HIGHEST
    x16f = x.astype(jnp.bfloat16).astype(jnp.float32)
    h0 = jnp.dot(x16f, w1.astype(jnp.float32), precision=hp)
    if bf16_epi:
        hb = jnp.maximum(h0.astype(jnp.bfloat16) + b1.astype(jnp.bfloat16), 0)
    else:
        hb = jnp.maximum(h0 + b1, 0.0).astype(jnp.bfloat16)
    o_full = jnp.dot(hb.astype(jnp.float32), w2.astype(jnp.float32), precision=hp) + b2
    ref = o_full.astype(jnp.bfloat16).astype(jnp.float32)[:batch, :num_classes]

    assert out.shape == (batch, num_classes)
    assert jnp.allclose(out, ref, atol=2e-2, rtol=2e-2), "mismatch vs JAX reference"

    print("KERNEL_OK")
</pallas_src>

<mosaic_0001>
module attributes {stable_mosaic.version = 11 : i64} {
  func.func @mlp_kernel(%arg0: i32, %arg1: memref<16x64xf32, #tpu.memory_space<vmem>>, %arg2: memref<64x1024xbf16, #tpu.memory_space<vmem>>, %arg3: memref<1x1024xf32, #tpu.memory_space<vmem>>, %arg4: memref<1024x128xbf16, #tpu.memory_space<vmem>>, %arg5: memref<1x128xf32, #tpu.memory_space<vmem>>, %arg6: memref<16x128xbf16, #tpu.memory_space<vmem>>) attributes {dimension_semantics = [#tpu.dimension_semantics<parallel>], iteration_bounds = array<i64: 1>, scalar_prefetch = 0 : i64, scratch_operands = 0 : i64, tpu.core_type = #tpu.core_type<tc>, window_params = [{transform_indices = @transform_0, window_bounds = array<i64: 16, 64>}, {pipeline_mode = #tpu.pipeline_mode<synchronous>, transform_indices = @transform_1, window_bounds = array<i64: 64, 1024>}, {pipeline_mode = #tpu.pipeline_mode<synchronous>, transform_indices = @transform_2, window_bounds = array<i64: 1, 1024>}, {pipeline_mode = #tpu.pipeline_mode<synchronous>, transform_indices = @transform_3, window_bounds = array<i64: 1024, 128>}, {pipeline_mode = #tpu.pipeline_mode<synchronous>, transform_indices = @transform_4, window_bounds = array<i64: 1, 128>}, {transform_indices = @transform_5, window_bounds = array<i64: 16, 128>}]} {
    %c0 = arith.constant 0 : index
    %c0_0 = arith.constant 0 : index
    %0 = vector.load %arg1[%c0, %c0_0] : memref<16x64xf32, #tpu.memory_space<vmem>>, vector<16x64xf32>
    %1 = arith.truncf %0 : vector<16x64xf32> to vector<16x64xbf16>
    %c0_1 = arith.constant 0 : index
    %c0_2 = arith.constant 0 : index
    %2 = vector.load %arg2[%c0_1, %c0_2] : memref<64x1024xbf16, #tpu.memory_space<vmem>>, vector<64x1024xbf16>
    %cst = arith.constant dense<0.000000e+00> : vector<16x1024xf32>
    %3 = tpu.matmul %1, %2, %cst {dimension_numbers = #tpu.dot_dimension_numbers<[1], [0], [0], [1], [0, 0, 1, 1], [], []>} : vector<16x64xbf16>, vector<64x1024xbf16>, vector<16x1024xf32> -> vector<16x1024xf32>
    %4 = arith.truncf %3 : vector<16x1024xf32> to vector<16x1024xbf16>
    %c0_3 = arith.constant 0 : index
    %c0_4 = arith.constant 0 : index
    %5 = vector.load %arg3[%c0_3, %c0_4] : memref<1x1024xf32, #tpu.memory_space<vmem>>, vector<1x1024xf32>
    %6 = arith.truncf %5 : vector<1x1024xf32> to vector<1x1024xbf16>
    %7 = vector.broadcast %6 : vector<1x1024xbf16> to vector<16x1024xbf16>
    %8 = arith.addf %4, %7 : vector<16x1024xbf16>
    %cst_5 = arith.constant 0.000000e+00 : bf16
    %9 = vector.broadcast %cst_5 : bf16 to vector<16x1024xbf16>
    %10 = arith.maximumf %8, %9 : vector<16x1024xbf16>
    %c0_6 = arith.constant 0 : index
    %c0_7 = arith.constant 0 : index
    %11 = vector.load %arg4[%c0_6, %c0_7] : memref<1024x128xbf16, #tpu.memory_space<vmem>>, vector<1024x128xbf16>
    %cst_8 = arith.constant dense<0.000000e+00> : vector<16x128xf32>
    %12 = tpu.matmul %10, %11, %cst_8 {dimension_numbers = #tpu.dot_dimension_numbers<[1], [0], [0], [1], [0, 0, 1, 1], [], []>} : vector<16x1024xbf16>, vector<1024x128xbf16>, vector<16x128xf32> -> vector<16x128xf32>
    %c0_9 = arith.constant 0 : index
    %c0_10 = arith.constant 0 : index
    %13 = vector.load %arg5[%c0_9, %c0_10] : memref<1x128xf32, #tpu.memory_space<vmem>>, vector<1x128xf32>
    %14 = vector.broadcast %13 : vector<1x128xf32> to vector<16x128xf32>
    %15 = arith.addf %12, %14 : vector<16x128xf32>
    %16 = arith.truncf %15 : vector<16x128xf32> to vector<16x128xbf16>
    %c0_11 = arith.constant 0 : index
    %c0_12 = arith.constant 0 : index
    %17 = vector.load %arg6[%c0_11, %c0_12] : memref<16x128xbf16, #tpu.memory_space<vmem>>, vector<16x128xbf16>
    tpu.vector_store %arg6[%c0_11, %c0_12], %16 {strides = array<i32>} : memref<16x128xbf16, #tpu.memory_space<vmem>>, vector<16x128xbf16>,
    return
  }
  func.func @transform_0(%arg0: i32) -> (i32, i32) {
    %c0_i32 = arith.constant 0 : i32
    %c0_i32_0 = arith.constant 0 : i32
    return %arg0, %c0_i32 : i32, i32
  }
  func.func @transform_1(%arg0: i32) -> (i32, i32) {
    %c0_i32 = arith.constant 0 : i32
    %c0_i32_0 = arith.constant 0 : i32
    %c0_i32_1 = arith.constant 0 : i32
    return %c0_i32, %c0_i32_0 : i32, i32
  }
  func.func @transform_2(%arg0: i32) -> (i32, i32) {
    %c0_i32 = arith.constant 0 : i32
    %c0_i32_0 = arith.constant 0 : i32
    %c0_i32_1 = arith.constant 0 : i32
    return %c0_i32, %c0_i32_0 : i32, i32
  }
  func.func @transform_3(%arg0: i32) -> (i32, i32) {
    %c0_i32 = arith.constant 0 : i32
    %c0_i32_0 = arith.constant 0 : i32
    %c0_i32_1 = arith.constant 0 : i32
    return %c0_i32, %c0_i32_0 : i32, i32
  }
  func.func @transform_4(%arg0: i32) -> (i32, i32) {
    %c0_i32 = arith.constant 0 : i32
    %c0_i32_0 = arith.constant 0 : i32
    %c0_i32_1 = arith.constant 0 : i32
    return %c0_i32, %c0_i32_0 : i32, i32
  }
  func.func @transform_5(%arg0: i32) -> (i32, i32) {
    %c0_i32 = arith.constant 0 : i32
    %c0_i32_0 = arith.constant 0 : i32
    return %arg0, %c0_i32 : i32, i32
  }
}

</mosaic_0001>

<llo_original>
// kernel: tpu_custom_call.1
$region0: #{tpu_custom_call.1}
  #allocation0 [shape = 'u32[]', space=smem, size = 0x4, offset = 0x4, fixed_abs, tag = 'smem constant byte address 0x4 - core index']
  #allocation1 [shape = 'u32[144,128]{1,0:T(1,128)}', space=vmem, size = 0x12000, scoped, tag = 'internal scratch']
  %s0 = inlined_call_operand.hbm [shape: f32[16,64], index: 0, kind: input, shape index: {}]
  %s1 = inlined_call_operand.hbm [shape: bf16[64,1024], index: 1, kind: input, shape index: {}]
  %s2 = inlined_call_operand.hbm [shape: f32[1,1024], index: 2, kind: input, shape index: {}]
  %s3 = inlined_call_operand.hbm [shape: bf16[1024,128], index: 3, kind: input, shape index: {}]
  %s4 = inlined_call_operand.vmem [shape: f32[1,128], index: 4, kind: input, shape index: {}]
  %s5 = inlined_call_operand.hbm [shape: bf16[16,128], index: 5, kind: output, shape index: {}]
  %s6 = sld [smem:[#allocation0]]
  $region46: #{tpu_custom_call.1} parent=0
    _
  %s8 = ssub.s32 1, %s6
  %s9 = scalar_select 0, %s8, %s6
  $region1: #{tpu_custom_call.1} parent=0
    #allocation2 [shape = 'u8[8192]{0}', space=vmem, size = 0x2000, scoped, tag = 'input window, operand 0, single buffered']
    #allocation3 [shape = 's32[1]{0}', space=sflag, size = 0x4, scoped, tag = 'scoped memory for tpu_custom_call.1']
    #allocation4 [shape = 's32[1]{0}', space=sflag, size = 0x4, scoped, tag = 'scoped memory for tpu_custom_call.1']
    #allocation5 [shape = 'u8[131072]{0}', space=vmem, size = 0x20000, scoped, tag = 'input window, operand 1, single buffered']
    #allocation6 [shape = 's32[1]{0}', space=sflag, size = 0x4, scoped, tag = 'scoped memory for tpu_custom_call.1']
    #allocation7 [shape = 'u8[4096]{0}', space=vmem, size = 0x1000, scoped, tag = 'input window, operand 2, single buffered']
    #allocation8 [shape = 'u8[262144]{0}', space=vmem, size = 0x40000, scoped, tag = 'input window, operand 3, single buffered']
    #allocation9 [shape = 's32[1]{0}', space=sflag, size = 0x4, scoped, tag = 'scoped memory for tpu_custom_call.1']
    #allocation10 [shape = 'u8[4096]{0}', space=vmem, size = 0x1000, scoped, tag = 'output window, operand 0, single buffered']
    %10 = vsyncpa [#allocation3], 0
    %11 = vsyncpa [#allocation6], 0
    %12 = vsyncpa [#allocation9], 0
    %13 = vsyncpa [#allocation4], 0
    // Predicated region
    $region2: #{tpu_custom_call.1} parent=1 // pred_check
      _
    $region3: #{tpu_custom_call.1} parent=1 // pred_check_branch
      %15 = sbr.rel (0) target = $region5
    $region4: #{tpu_custom_call.1} parent=1 // pred_region
      %s17 = ssub.s32 256, 256
      %18 = vsyncadd [#allocation3], %s17
      %s19 = sshll.u32 [#allocation2], 4
      %s20 = int_to_ptr.vmem [resolvable:$true] %s19
      %25 = dma.hbm_to_vmem [thread:$0]  %s0, 256, %s20, [#allocation3], 128, 128, 8
    $region5: #{tpu_custom_call.1} parent=1 // pred_fallthru
      _
    // Predicated region
    $region6: #{tpu_custom_call.1} parent=1 // pred_check
      _
    $region7: #{tpu_custom_call.1} parent=1 // pred_check_branch
      %27 = sbr.rel (0) target = $region9
    $region8: #{tpu_custom_call.1} parent=1 // pred_region
      %s29 = ssub.s32 4096, 4096
      %30 = vsyncadd [#allocation6], %s29
      %s31 = sshll.u32 [#allocation5], 4
      %s32 = int_to_ptr.vmem [resolvable:$true] %s31
      %37 = dma.hbm_to_vmem [thread:$0]  %s1, 4096, %s32, [#allocation6], 512, 512, 32
    $region9: #{tpu_custom_call.1} parent=1 // pred_fallthru
      _
    // Predicated region
    $region10: #{tpu_custom_call.1} parent=1 // pred_check
      _
    $region11: #{tpu_custom_call.1} parent=1 // pred_check_branch
      %39 = sbr.rel (0) target = $region13
    $region12: #{tpu_custom_call.1} parent=1 // pred_region
      %s41 = ssub.s32 128, 128
      %42 = vsyncadd [#allocation6], %s41
      %s44 = sshll.u32 [#allocation7], 4
      %s45 = int_to_ptr.vmem [resolvable:$true] %s44
      %47 = dma.hbm_to_vmem [thread:$0]  %s2, 128, %s45, [#allocation6]
    $region13: #{tpu_custom_call.1} parent=1 // pred_fallthru
      _
    // Predicated region
    $region14: #{tpu_custom_call.1} parent=1 // pred_check
      _
    $region15: #{tpu_custom_call.1} parent=1 // pred_check_branch
      %49 = sbr.rel (0) target = $region17
    $region16: #{tpu_custom_call.1} parent=1 // pred_region
      %s51 = ssub.s32 8192, 8192
      %52 = vsyncadd [#allocation9], %s51
      %s53 = sshll.u32 [#allocation8], 4
      %s54 = int_to_ptr.vmem [resolvable:$true] %s53
      %59 = dma.hbm_to_vmem [thread:$0]  %s3, 8192, %s54, [#allocation9], 64, 64, 4
    $region17: #{tpu_custom_call.1} parent=1 // pred_fallthru
      _
    // Predicated region
    $region18: #{tpu_custom_call.1} parent=1 // pred_check
      _
    $region19: #{tpu_custom_call.1} parent=1 // pred_check_branch
      %61 = sbr.rel (0) target = $region21
    $region20: #{tpu_custom_call.1} parent=1 // pred_region
      _
    $region21: #{tpu_custom_call.1} parent=1 // pred_fallthru
      _
    // Predicated region
    $region22: #{tpu_custom_call.1} parent=1 // pred_check
      _
    $region23: #{tpu_custom_call.1} parent=1 // pred_check_branch
      %63 = sbr.rel (0) target = $region25
    $region24: #{tpu_custom_call.1} parent=1 // pred_region
      %64 = dma.done [#allocation3], 256
    $region25: #{tpu_custom_call.1} parent=1 // pred_fallthru
      _
    // Predicated region
    $region26: #{tpu_custom_call.1} parent=1 // pred_check
      _
    $region27: #{tpu_custom_call.1} parent=1 // pred_check_branch
      %66 = sbr.rel (0) target = $region29
    $region28: #{tpu_custom_call.1} parent=1 // pred_region
      %67 = dma.done [#allocation6], 4096
    $region29: #{tpu_custom_call.1} parent=1 // pred_fallthru
      _
    // Predicated region
    $region30: #{tpu_custom_call.1} parent=1 // pred_check
      _
    $region31: #{tpu_custom_call.1} parent=1 // pred_check_branch
      %69 = sbr.rel (0) target = $region33
    $region32: #{tpu_custom_call.1} parent=1 // pred_region
      %70 = dma.done [#allocation6], 128
    $region33: #{tpu_custom_call.1} parent=1 // pred_fallthru
      _
    // Predicated region
    $region34: #{tpu_custom_call.1} parent=1 // pred_check
      _
    $region35: #{tpu_custom_call.1} parent=1 // pred_check_branch
      %72 = sbr.rel (0) target = $region37
    $region36: #{tpu_custom_call.1} parent=1 // pred_region
      %73 = dma.done [#allocation9], 8192
    $region37: #{tpu_custom_call.1} parent=1 // pred_fallthru
      _
    %v75 = vld [vmem:[#allocation2] sm:$0xff]
    %v76 = vld [vmem:[#allocation2 + $0x8] sm:$0xff]
    %v77 = vpack.c.bf16 %v76, %v75
    %v78 = vld [vmem:[#allocation5] sm:$0xff]
    %v79 = vld [vmem:[#allocation5 + $0x8] sm:$0xff]
    %v80 = vld [vmem:[#allocation5 + $0x10] sm:$0xff]
    %v81 = vld [vmem:[#allocation5 + $0x18] sm:$0xff]
    %v82 = vld [vmem:[#allocation5 + $0x20] sm:$0xff]
    %v83 = vld [vmem:[#allocation5 + $0x28] sm:$0xff]
    %v84 = vld [vmem:[#allocation5 + $0x30] sm:$0xff]
    %v85 = vld [vmem:[#allocation5 + $0x38] sm:$0xff]
    %v86 = vld [vmem:[#allocation5 + $0x40] sm:$0xff]
    %v87 = vld [vmem:[#allocation5 + $0x48] sm:$0xff]
    %v88 = vld [vmem:[#allocation5 + $0x50] sm:$0xff]
    %v89 = vld [vmem:[#allocation5 + $0x58] sm:$0xff]
    %v90 = vld [vmem:[#allocation5 + $0x60] sm:$0xff]
    %v91 = vld [vmem:[#allocation5 + $0x68] sm:$0xff]
    %v92 = vld [vmem:[#allocation5 + $0x70] sm:$0xff]
    %v93 = vld [vmem:[#allocation5 + $0x78] sm:$0xff]
    %v94 = vld [vmem:[#allocation5 + $0x80] sm:$0xff]
    %v95 = vld [vmem:[#allocation5 + $0x88] sm:$0xff]
    %v96 = vld [vmem:[#allocation5 + $0x90] sm:$0xff]
    %v97 = vld [vmem:[#allocation5 + $0x98] sm:$0xff]
    %v98 = vld [vmem:[#allocation5 + $0xa0] sm:$0xff]
    %v99 = vld [vmem:[#allocation5 + $0xa8] sm:$0xff]
    %v100 = vld [vmem:[#allocation5 + $0xb0] sm:$0xff]
    %v101 = vld [vmem:[#allocation5 + $0xb8] sm:$0xff]
    %v102 = vld [vmem:[#allocation5 + $0xc0] sm:$0xff]
    %v103 = vld [vmem:[#allocation5 + $0xc8] sm:$0xff]
    %v104 = vld [vmem:[#allocation5 + $0xd0] sm:$0xff]
    %v105 = vld [vmem:[#allocation5 + $0xd8] sm:$0xff]
    %v106 = vld [vmem:[#allocation5 + $0xe0] sm:$0xff]
    %v107 = vld [vmem:[#allocation5 + $0xe8] sm:$0xff]
    %v108 = vld [vmem:[#allocation5 + $0xf0] sm:$0xff]
    %v109 = vld [vmem:[#allocation5 + $0xf8] sm:$0xff]
    %v142 = vunpack.c.l.b16 %v78
    %v143 = vunpack.c.h.b16 %v78
    %v144 = vunpack.c.l.b16 %v79
    %v145 = vunpack.c.h.b16 %v79
    %v146 = vunpack.c.l.b16 %v80
    %v147 = vunpack.c.h.b16 %v80
    %v148 = vunpack.c.l.b16 %v81
    %v149 = vunpack.c.h.b16 %v81
    %v150 = vunpack.c.l.b16 %v82
    %v151 = vunpack.c.h.b16 %v82
    %v152 = vunpack.c.l.b16 %v83
    %v153 = vunpack.c.h.b16 %v83
    %v154 = vunpack.c.l.b16 %v84
    %v155 = vunpack.c.h.b16 %v84
    %v156 = vunpack.c.l.b16 %v85
    %v157 = vunpack.c.h.b16 %v85
    %v158 = vunpack.c.l.b16 %v86
    %v159 = vunpack.c.h.b16 %v86
    %v160 = vunpack.c.l.b16 %v87
    %v161 = vunpack.c.h.b16 %v87
    %v162 = vunpack.c.l.b16 %v88
    %v163 = vunpack.c.h.b16 %v88
    %v164 = vunpack.c.l.b16 %v89
    %v165 = vunpack.c.h.b16 %v89
    %v166 = vunpack.c.l.b16 %v90
    %v167 = vunpack.c.h.b16 %v90
    %v168 = vunpack.c.l.b16 %v91
    %v169 = vunpack.c.h.b16 %v91
    %v170 = vunpack.c.l.b16 %v92
    %v171 = vunpack.c.h.b16 %v92
    %v172 = vunpack.c.l.b16 %v93
    %v173 = vunpack.c.h.b16 %v93
    %v174 = vunpack.c.l.b16 %v94
    %v175 = vunpack.c.h.b16 %v94
    %v176 = vunpack.c.l.b16 %v95
    %v177 = vunpack.c.h.b16 %v95
    %v178 = vunpack.c.l.b16 %v96
    %v179 = vunpack.c.h.b16 %v96
    %v180 = vunpack.c.l.b16 %v97
    %v181 = vunpack.c.h.b16 %v97
    %v182 = vunpack.c.l.b16 %v98
    %v183 = vunpack.c.h.b16 %v98
    %v184 = vunpack.c.l.b16 %v99
    %v185 = vunpack.c.h.b16 %v99
    %v186 = vunpack.c.l.b16 %v100
    %v187 = vunpack.c.h.b16 %v100
    %v188 = vunpack.c.l.b16 %v101
    %v189 = vunpack.c.h.b16 %v101
    %v190 = vunpack.c.l.b16 %v102
    %v191 = vunpack.c.h.b16 %v102
    %v192 = vunpack.c.l.b16 %v103
    %v193 = vunpack.c.h.b16 %v103
    %v194 = vunpack.c.l.b16 %v104
    %v195 = vunpack.c.h.b16 %v104
    %v196 = vunpack.c.l.b16 %v105
    %v197 = vunpack.c.h.b16 %v105
    %v198 = vunpack.c.l.b16 %v106
    %v199 = vunpack.c.h.b16 %v106
    %v200 = vunpack.c.l.b16 %v107
    %v201 = vunpack.c.h.b16 %v107
    %v202 = vunpack.c.l.b16 %v108
    %v203 = vunpack.c.h.b16 %v108
    %v204 = vunpack.c.l.b16 %v109
    %v205 = vunpack.c.h.b16 %v109
    %v206 = vpack.c.b16 %v150, %v142
    %v207 = vpack.c.b16 %v151, %v143
    %v208 = vpack.c.b16 %v152, %v144
    %v209 = vpack.c.b16 %v153, %v145
    %v210 = vpack.c.b16 %v154, %v146
    %v211 = vpack.c.b16 %v155, %v147
    %v212 = vpack.c.b16 %v156, %v148
    %v213 = vpack.c.b16 %v157, %v149
    %v214 = vpack.c.b16 %v166, %v158
    %v215 = vpack.c.b16 %v167, %v159
    %v216 = vpack.c.b16 %v168, %v160
    %v217 = vpack.c.b16 %v169, %v161
    %v218 = vpack.c.b16 %v170, %v162
    %v219 = vpack.c.b16 %v171, %v163
    %v220 = vpack.c.b16 %v172, %v164
    %v221 = vpack.c.b16 %v173, %v165
    %v222 = vpack.c.b16 %v182, %v174
    %v223 = vpack.c.b16 %v183, %v175
    %v224 = vpack.c.b16 %v184, %v176
    %v225 = vpack.c.b16 %v185, %v177
    %v226 = vpack.c.b16 %v186, %v178
    %v227 = vpack.c.b16 %v187, %v179
    %v228 = vpack.c.b16 %v188, %v180
    %v229 = vpack.c.b16 %v189, %v181
    %v230 = vpack.c.b16 %v198, %v190
    %v231 = vpack.c.b16 %v199, %v191
    %v232 = vpack.c.b16 %v200, %v192
    %v233 = vpack.c.b16 %v201, %v193
    %v234 = vpack.c.b16 %v202, %v194
    %v235 = vpack.c.b16 %v203, %v195
    %v236 = vpack.c.b16 %v204, %v196
    %v237 = vpack.c.b16 %v205, %v197
    %vm270 = vcmask 523264
    %v272 = vsel %vm270, %v77, 0
    %274 = vmatprep.subr.bf16.mxu0 %v207
    %275 = vmatpush1.bf16.msra.mxu0 %v206
    %276 = vmatprep.subr.bf16.mxu0 %v215
    %277 = vmatpush1.bf16.msra.mxu0 %v214
    %278 = vmatprep.subr.bf16.mxu0 %v223
    %279 = vmatpush1.bf16.msra.mxu0 %v222
    %280 = vmatprep.subr.bf16.mxu0 %v231
    %281 = vmatpush1.bf16.msra.mxu0 %v230
    %282 = vmatprep.subr.bf16.mxu0 0
    %283 = vmatpush1.bf16.msra.mxu0 0
    %284 = vmatprep.subr.bf16.mxu0 0
    %285 = vmatpush1.bf16.msra.mxu0 0
    %286 = vmatprep.subr.bf16.mxu0 0
    %287 = vmatpush1.bf16.msra.mxu0 0
    %288 = vmatprep.subr.bf16.mxu0 0
    %289 = vmatpush1.bf16.msra.mxu0 0
    %290 = vmatprep.subr.bf16.mxu0 0
    %291 = vmatpush1.bf16.msra.mxu0 0
    %292 = vmatprep.subr.bf16.mxu0 0
    %293 = vmatpush1.bf16.msra.mxu0 0
    %294 = vmatprep.subr.bf16.mxu0 0
    %295 = vmatpush1.bf16.msra.mxu0 0
    %296 = vmatprep.subr.bf16.mxu0 0
    %297 = vmatpush1.bf16.msra.mxu0 0
    %298 = vmatprep.subr.bf16.mxu0 0
    %299 = vmatpush1.bf16.msra.mxu0 0
    %300 = vmatprep.subr.bf16.mxu0 0
    %301 = vmatpush1.bf16.msra.mxu0 0
    %302 = vmatprep.subr.bf16.mxu0 0
    %303 = vmatpush1.bf16.msra.mxu0 0
    %304 = vmatprep.subr.bf16.mxu0 0
    %305 = vmatpush1.bf16.msra.mxu0 0
    %306 = vmatprep.mubr.bf16.mxu0 0
    %307 = vmatmul.mubr.bf16.gmra.mrb[0].mxu0 %v272
    %v308 = vpop.f32.mrb[0].mxu0
    %v309 = vadd.f32 0.0, %v308
    %v310 = vpop.f32.mrb[0].mxu0
    %v311 = vadd.f32 0.0, %v310
    %v312 = vpop.f32.mrb[0].mxu0
    %v313 = vadd.f32 0.0, %v312
    %v314 = vpop.f32.mrb[0].mxu0
    %v315 = vadd.f32 0.0, %v314
    %316 = vdwg.mxu0
    %317 = vmatprep.subr.bf16.mxu0 %v209
    %318 = vmatpush1.bf16.msra.mxu0 %v208
    %319 = vmatprep.subr.bf16.mxu0 %v217
    %320 = vmatpush1.bf16.msra.mxu0 %v216
    %321 = vmatprep.subr.bf16.mxu0 %v225
    %322 = vmatpush1.bf16.msra.mxu0 %v224
    %323 = vmatprep.subr.bf16.mxu0 %v233
    %324 = vmatpush1.bf16.msra.mxu0 %v232
    %325 = vmatprep.subr.bf16.mxu0 0
    %326 = vmatpush1.bf16.msra.mxu0 0
    %327 = vmatprep.subr.bf16.mxu0 0
    %328 = vmatpush1.bf16.msra.mxu0 0
    %329 = vmatprep.subr.bf16.mxu0 0
    %330 = vmatpush1.bf16.msra.mxu0 0
    %331 = vmatprep.subr.bf16.mxu0 0
    %332 = vmatpush1.bf16.msra.mxu0 0
    %333 = vmatprep.subr.bf16.mxu0 0
    %334 = vmatpush1.bf16.msra.mxu0 0
    %335 = vmatprep.subr.bf16.mxu0 0
    %336 = vmatpush1.bf16.msra.mxu0 0
    %337 = vmatprep.subr.bf16.mxu0 0
    %338 = vmatpush1.bf16.msra.mxu0 0
    %339 = vmatprep.subr.bf16.mxu0 0
    %340 = vmatpush1.bf16.msra.mxu0 0
    %341 = vmatprep.subr.bf16.mxu0 0
    %342 = vmatpush1.bf16.msra.mxu0 0
    %343 = vmatprep.subr.bf16.mxu0 0
    %344 = vmatpush1.bf16.msra.mxu0 0
    %345 = vmatprep.subr.bf16.mxu0 0
    %346 = vmatpush1.bf16.msra.mxu0 0
    %347 = vmatprep.subr.bf16.mxu0 0
    %348 = vmatpush1.bf16.msra.mxu0 0
    %349 = vmatprep.mubr.bf16.mxu0 0
    %350 = vmatmul.mubr.bf16.gmra.mrb[0].mxu0 %v272
    %v351 = vpop.f32.mrb[0].mxu0
    %v352 = vadd.f32 0.0, %v351
    %v353 = vpop.f32.mrb[0].mxu0
    %v354 = vadd.f32 0.0, %v353
    %v355 = vpop.f32.mrb[0].mxu0
    %v356 = vadd.f32 0.0, %v355
    %v357 = vpop.f32.mrb[0].mxu0
    %v358 = vadd.f32 0.0, %v357
    %359 = vdwg.mxu0
    %360 = vmatprep.subr.bf16.mxu0 %v211
    %361 = vmatpush1.bf16.msra.mxu0 %v210
    %362 = vmatprep.subr.bf16.mxu0 %v219
    %363 = vmatpush1.bf16.msra.mxu0 %v218
    %364 = vmatprep.subr.bf16.mxu0 %v227
    %365 = vmatpush1.bf16.msra.mxu0 %v226
    %366 = vmatprep.subr.bf16.mxu0 %v235
    %367 = vmatpush1.bf16.msra.mxu0 %v234
    %368 = vmatprep.subr.bf16.mxu0 0
    %369 = vmatpush1.bf16.msra.mxu0 0
    %370 = vmatprep.subr.bf16.mxu0 0
    %371 = vmatpush1.bf16.msra.mxu0 0
    %372 = vmatprep.subr.bf16.mxu0 0
    %373 = vmatpush1.bf16.msra.mxu0 0
    %374 = vmatprep.subr.bf16.mxu0 0
    %375 = vmatpush1.bf16.msra.mxu0 0
    %376 = vmatprep.subr.bf16.mxu0 0
    %377 = vmatpush1.bf16.msra.mxu0 0
    %378 = vmatprep.subr.bf16.mxu0 0
    %379 = vmatpush1.bf16.msra.mxu0 0
    %380 = vmatprep.subr.bf16.mxu0 0
    %381 = vmatpush1.bf16.msra.mxu0 0
    %382 = vmatprep.subr.bf16.mxu0 0
    %383 = vmatpush1.bf16.msra.mxu0 0
    %384 = vmatprep.subr.bf16.mxu0 0
    %385 = vmatpush1.bf16.msra.mxu0 0
    %386 = vmatprep.subr.bf16.mxu0 0
    %387 = vmatpush1.bf16.msra.mxu0 0
    %388 = vmatprep.subr.bf16.mxu0 0
    %389 = vmatpush1.bf16.msra.mxu0 0
    %390 = vmatprep.subr.bf16.mxu0 0
    %391 = vmatpush1.bf16.msra.mxu0 0
    %392 = vmatprep.mubr.bf16.mxu0 0
    %393 = vmatmul.mubr.bf16.gmra.mrb[0].mxu0 %v272
    %v394 = vpop.f32.mrb[0].mxu0
    %v395 = vadd.f32 0.0, %v394
    %v396 = vpop.f32.mrb[0].mxu0
    %v397 = vadd.f32 0.0, %v396
    %v398 = vpop.f32.mrb[0].mxu0
    %v399 = vadd.f32 0.0, %v398
    %v400 = vpop.f32.mrb[0].mxu0
    %v401 = vadd.f32 0.0, %v400
    %402 = vdwg.mxu0
    %403 = vmatprep.subr.bf16.mxu0 %v213
    %404 = vmatpush1.bf16.msra.mxu0 %v212
    %405 = vmatprep.subr.bf16.mxu0 %v221
    %406 = vmatpush1.bf16.msra.mxu0 %v220
    %407 = vmatprep.subr.bf16.mxu0 %v229
    %408 = vmatpush1.bf16.msra.mxu0 %v228
    %409 = vmatprep.subr.bf16.mxu0 %v237
    %410 = vmatpush1.bf16.msra.mxu0 %v236
    %411 = vmatprep.subr.bf16.mxu0 0
    %412 = vmatpush1.bf16.msra.mxu0 0
    %413 = vmatprep.subr.bf16.mxu0 0
    %414 = vmatpush1.bf16.msra.mxu0 0
    %415 = vmatprep.subr.bf16.mxu0 0
    %416 = vmatpush1.bf16.msra.mxu0 0
    %417 = vmatprep.subr.bf16.mxu0 0
    %418 = vmatpush1.bf16.msra.mxu0 0
    %419 = vmatprep.subr.bf16.mxu0 0
    %420 = vmatpush1.bf16.msra.mxu0 0
    %421 = vmatprep.subr.bf16.mxu0 0
    %422 = vmatpush1.bf16.msra.mxu0 0
    %423 = vmatprep.subr.bf16.mxu0 0
    %424 = vmatpush1.bf16.msra.mxu0 0
    %425 = vmatprep.subr.bf16.mxu0 0
    %426 = vmatpush1.bf16.msra.mxu0 0
    %427 = vmatprep.subr.bf16.mxu0 0
    %428 = vmatpush1.bf16.msra.mxu0 0
    %429 = vmatprep.subr.bf16.mxu0 0
    %430 = vmatpush1.bf16.msra.mxu0 0
    %431 = vmatprep.subr.bf16.mxu0 0
    %432 = vmatpush1.bf16.msra.mxu0 0
    %433 = vmatprep.subr.bf16.mxu0 0
    %434 = vmatpush1.bf16.msra.mxu0 0
    %435 = vmatprep.mubr.bf16.mxu0 0
    %436 = vmatmul.mubr.bf16.gmra.mrb[0].mxu0 %v272
    %v437 = vpop.f32.mrb[0].mxu0
    %v438 = vadd.f32 0.0, %v437
    %v439 = vpop.f32.mrb[0].mxu0
    %v440 = vadd.f32 0.0, %v439
    %v441 = vpop.f32.mrb[0].mxu0
    %v442 = vadd.f32 0.0, %v441
    %v443 = vpop.f32.mrb[0].mxu0
    %v444 = vadd.f32 0.0, %v443
    %445 = vdwg.mxu0
    %v446 = vpack.c.bf16 %v313, %v309
    %v447 = vpack.c.bf16 %v315, %v311
    %v448 = vpack.c.bf16 %v356, %v352
    %v449 = vpack.c.bf16 %v358, %v354
    %v450 = vpack.c.bf16 %v399, %v395
    %v451 = vpack.c.bf16 %v401, %v397
    %v452 = vpack.c.bf16 %v442, %v438
    %v453 = vpack.c.bf16 %v444, %v440
    %v454 = vld [vmem:[#allocation7] sm:$0xff]
    %v456 = vlaneseq
    %v457 = vshrl.u32 %v456, 7
    %v458 = vsub.s32 0, %v457
    %v459 = vrot.slane %v454, %v458
    %v460 = vlaneseq
    %v461 = vshrl.u32 %v460, 7
    %v462 = vsub.s32 1, %v461
    %v463 = vrot.slane %v454, %v462
    %v464 = vlaneseq
    %v465 = vshrl.u32 %v464, 7
    %v466 = vsub.s32 2, %v465
    %v467 = vrot.slane %v454, %v466
    %v468 = vlaneseq
    %v469 = vshrl.u32 %v468, 7
    %v470 = vsub.s32 3, %v469
    %v471 = vrot.slane %v454, %v470
    %v472 = vlaneseq
    %v473 = vshrl.u32 %v472, 7
    %v474 = vsub.s32 4, %v473
    %v475 = vrot.slane %v454, %v474
    %v476 = vlaneseq
    %v477 = vshrl.u32 %v476, 7
    %v478 = vsub.s32 5, %v477
    %v479 = vrot.slane %v454, %v478
    %v480 = vlaneseq
    %v481 = vshrl.u32 %v480, 7
    %v482 = vsub.s32 6, %v481
    %v483 = vrot.slane %v454, %v482
    %v484 = vlaneseq
    %v485 = vshrl.u32 %v484, 7
    %v486 = vsub.s32 7, %v485
    %v487 = vrot.slane %v454, %v486
    %v496 = vpack.c.bf16 %v459, %v459
    %v497 = vpack.c.bf16 %v463, %v463
    %v498 = vpack.c.bf16 %v467, %v467
    %v499 = vpack.c.bf16 %v471, %v471
    %v500 = vpack.c.bf16 %v475, %v475
    %v501 = vpack.c.bf16 %v479, %v479
    %v502 = vpack.c.bf16 %v483, %v483
    %v503 = vpack.c.bf16 %v487, %v487
    %v505 = vpack.i.b16 %v496, %v496
    %v507 = vlaneseq
    %v508 = vshrl.u32 %v507, 7
    %v509 = vsub.s32 0, %v508
    %v510 = vrot.slane %v505, %v509
    %v512 = vpack.i.b16 %v497, %v497
    %v514 = vlaneseq
    %v515 = vshrl.u32 %v514, 7
    %v516 = vsub.s32 0, %v515
    %v517 = vrot.slane %v512, %v516
    %v519 = vpack.i.b16 %v498, %v498
    %v521 = vlaneseq
    %v522 = vshrl.u32 %v521, 7
    %v523 = vsub.s32 0, %v522
    %v524 = vrot.slane %v519, %v523
    %v526 = vpack.i.b16 %v499, %v499
    %v528 = vlaneseq
    %v529 = vshrl.u32 %v528, 7
    %v530 = vsub.s32 0, %v529
    %v531 = vrot.slane %v526, %v530
    %v533 = vpack.i.b16 %v500, %v500
    %v535 = vlaneseq
    %v536 = vshrl.u32 %v535, 7
    %v537 = vsub.s32 0, %v536
    %v538 = vrot.slane %v533, %v537
    %v540 = vpack.i.b16 %v501, %v501
    %v542 = vlaneseq
    %v543 = vshrl.u32 %v542, 7
    %v544 = vsub.s32 0, %v543
    %v545 = vrot.slane %v540, %v544
    %v547 = vpack.i.b16 %v502, %v502
    %v549 = vlaneseq
    %v550 = vshrl.u32 %v549, 7
    %v551 = vsub.s32 0, %v550
    %v552 = vrot.slane %v547, %v551
    %v554 = vpack.i.b16 %v503, %v503
    %v556 = vlaneseq
    %v557 = vshrl.u32 %v556, 7
    %v558 = vsub.s32 0, %v557
    %v559 = vrot.slane %v554, %v558
    %v560 = vadd.bf16 %v446, %v510
    %v561 = vadd.bf16 %v447, %v517
    %v562 = vadd.bf16 %v448, %v524
    %v563 = vadd.bf16 %v449, %v531
    %v564 = vadd.bf16 %v450, %v538
    %v565 = vadd.bf16 %v451, %v545
    %v566 = vadd.bf16 %v452, %v552
    %v567 = vadd.bf16 %v453, %v559
    %v568 = vmax.bf16 %v560, 0
    %v569 = vmax.bf16 %v561, 0
    %v570 = vmax.bf16 %v562, 0
    %v571 = vmax.bf16 %v563, 0
    %v572 = vmax.bf16 %v564, 0
    %v573 = vmax.bf16 %v565, 0
    %v574 = vmax.bf16 %v566, 0
    %v575 = vmax.bf16 %v567, 0
    %v576 = vld [vmem:[#allocation8] sm:$0xf]
    %v577 = vld [vmem:[#allocation8 + $0x4] sm:$0xf]
    %v578 = vld [vmem:[#allocation8 + $0x8] sm:$0xf]
    %v579 = vld [vmem:[#allocation8 + $0xc] sm:$0xf]
    %v580 = vld [vmem:[#allocation8 + $0x10] sm:$0xf]
    %v581 = vld [vmem:[#allocation8 + $0x14] sm:$0xf]
    %v582 = vld [vmem:[#allocation8 + $0x18] sm:$0xf]
    %v583 = vld [vmem:[#allocation8 + $0x1c] sm:$0xf]
    %v584 = vld [vmem:[#allocation8 + $0x20] sm:$0xf]
    %v585 = vld [vmem:[#allocation8 + $0x24] sm:$0xf]
    %v586 = vld [vmem:[#allocation8 + $0x28] sm:$0xf]
    %v587 = vld [vmem:[#allocation8 + $0x2c] sm:$0xf]
    %v588 = vld [vmem:[#allocation8 + $0x30] sm:$0xf]
    %v589 = vld [vmem:[#allocation8 + $0x34] sm:$0xf]
    %v590 = vld [vmem:[#allocation8 + $0x38] sm:$0xf]
    %v591 = vld [vmem:[#allocation8 + $0x3c] sm:$0xf]
    %v592 = vld [vmem:[#allocation8 + $0x40] sm:$0xf]
    %v593 = vld [vmem:[#allocation8 + $0x44] sm:$0xf]
    %v594 = vld [vmem:[#allocation8 + $0x48] sm:$0xf]
    %v595 = vld [vmem:[#allocation8 + $0x4c] sm:$0xf]
    %v596 = vld [vmem:[#allocation8 + $0x50] sm:$0xf]
    %v597 = vld [vmem:[#allocation8 + $0x54] sm:$0xf]
    %v598 = vld [vmem:[#allocation8 + $0x58] sm:$0xf]
    %v599 = vld [vmem:[#allocation8 + $0x5c] sm:$0xf]
    %v600 = vld [vmem:[#allocation8 + $0x60] sm:$0xf]
    %v601 = vld [vmem:[#allocation8 + $0x64] sm:$0xf]
    %v602 = vld [vmem:[#allocation8 + $0x68] sm:$0xf]
    %v603 = vld [vmem:[#allocation8 + $0x6c] sm:$0xf]
    %v604 = vld [vmem:[#allocation8 + $0x70] sm:$0xf]
    %v605 = vld [vmem:[#allocation8 + $0x74] sm:$0xf]
    %v606 = vld [vmem:[#allocation8 + $0x78] sm:$0xf]
    %v607 = vld [vmem:[#allocation8 + $0x7c] sm:$0xf]
    %v608 = vld [vmem:[#allocation8 + $0x80] sm:$0xf]
    %v609 = vld [vmem:[#allocation8 + $0x84] sm:$0xf]
    %v610 = vld [vmem:[#allocation8 + $0x88] sm:$0xf]
    %v611 = vld [vmem:[#allocation8 + $0x8c] sm:$0xf]
    %v612 = vld [vmem:[#allocation8 + $0x90] sm:$0xf]
    %v613 = vld [vmem:[#allocation8 + $0x94] sm:$0xf]
    %v614 = vld [vmem:[#allocation8 + $0x98] sm:$0xf]
    %v615 = vld [vmem:[#allocation8 + $0x9c] sm:$0xf]
    %v616 = vld [vmem:[#allocation8 + $0xa0] sm:$0xf]
    %v617 = vld [vmem:[#allocation8 + $0xa4] sm:$0xf]
    %v618 = vld [vmem:[#allocation8 + $0xa8] sm:$0xf]
    %v619 = vld [vmem:[#allocation8 + $0xac] sm:$0xf]
    %v620 = vld [vmem:[#allocation8 + $0xb0] sm:$0xf]
    %v621 = vld [vmem:[#allocation8 + $0xb4] sm:$0xf]
    %v622 = vld [vmem:[#allocation8 + $0xb8] sm:$0xf]
    %v623 = vld [vmem:[#allocation8 + $0xbc] sm:$0xf]
    %v624 = vld [vmem:[#allocation8 + $0xc0] sm:$0xf]
    %v625 = vld [vmem:[#allocation8 + $0xc4] sm:$0xf]
    %v626 = vld [vmem:[#allocation8 + $0xc8] sm:$0xf]
    %v627 = vld [vmem:[#allocation8 + $0xcc] sm:$0xf]
    %v628 = vld [vmem:[#allocation8 + $0xd0] sm:$0xf]
    %v629 = vld [vmem:[#allocation8 + $0xd4] sm:$0xf]
    %v630 = vld [vmem:[#allocation8 + $0xd8] sm:$0xf]
    %v631 = vld [vmem:[#allocation8 + $0xdc] sm:$0xf]
    %v632 = vld [vmem:[#allocation8 + $0xe0] sm:$0xf]
    %v633 = vld [vmem:[#allocation8 + $0xe4] sm:$0xf]
    %v634 = vld [vmem:[#allocation8 + $0xe8] sm:$0xf]
    %v635 = vld [vmem:[#allocation8 + $0xec] sm:$0xf]
    %v636 = vld [vmem:[#allocation8 + $0xf0] sm:$0xf]
    %v637 = vld [vmem:[#allocation8 + $0xf4] sm:$0xf]
    %v638 = vld [vmem:[#allocation8 + $0xf8] sm:$0xf]
    %v639 = vld [vmem:[#allocation8 + $0xfc] sm:$0xf]
    %v640 = vld [vmem:[#allocation8 + $0x100] sm:$0xf]
    %v641 = vld [vmem:[#allocation8 + $0x104] sm:$0xf]
    %v642 = vld [vmem:[#allocation8 + $0x108] sm:$0xf]
    %v643 = vld [vmem:[#allocation8 + $0x10c] sm:$0xf]
    %v644 = vld [vmem:[#allocation8 + $0x110] sm:$0xf]
    %v645 = vld [vmem:[#allocation8 + $0x114] sm:$0xf]
    %v646 = vld [vmem:[#allocation8 + $0x118] sm:$0xf]
    %v647 = vld [vmem:[#allocation8 + $0x11c] sm:$0xf]
    %v648 = vld [vmem:[#allocation8 + $0x120] sm:$0xf]
    %v649 = vld [vmem:[#allocation8 + $0x124] sm:$0xf]
    %v650 = vld [vmem:[#allocation8 + $0x128] sm:$0xf]
    %v651 = vld [vmem:[#allocation8 + $0x12c] sm:$0xf]
    %v652 = vld [vmem:[#allocation8 + $0x130] sm:$0xf]
    %v653 = vld [vmem:[#allocation8 + $0x134] sm:$0xf]
    %v654 = vld [vmem:[#allocation8 + $0x138] sm:$0xf]
    %v655 = vld [vmem:[#allocation8 + $0x13c] sm:$0xf]
    %v656 = vld [vmem:[#allocation8 + $0x140] sm:$0xf]
    %v657 = vld [vmem:[#allocation8 + $0x144] sm:$0xf]
    %v658 = vld [vmem:[#allocation8 + $0x148] sm:$0xf]
    %v659 = vld [vmem:[#allocation8 + $0x14c] sm:$0xf]
    %v660 = vld [vmem:[#allocation8 + $0x150] sm:$0xf]
    %v661 = vld [vmem:[#allocation8 + $0x154] sm:$0xf]
    %v662 = vld [vmem:[#allocation8 + $0x158] sm:$0xf]
    %v663 = vld [vmem:[#allocation8 + $0x15c] sm:$0xf]
    %v664 = vld [vmem:[#allocation8 + $0x160] sm:$0xf]
    %v665 = vld [vmem:[#allocation8 + $0x164] sm:$0xf]
    %v666 = vld [vmem:[#allocation8 + $0x168] sm:$0xf]
    %v667 = vld [vmem:[#allocation8 + $0x16c] sm:$0xf]
    %v668 = vld [vmem:[#allocation8 + $0x170] sm:$0xf]
    %v669 = vld [vmem:[#allocation8 + $0x174] sm:$0xf]
    %v670 = vld [vmem:[#allocation8 + $0x178] sm:$0xf]
    %v671 = vld [vmem:[#allocation8 + $0x17c] sm:$0xf]
    %v672 = vld [vmem:[#allocation8 + $0x180] sm:$0xf]
    %v673 = vld [vmem:[#allocation8 + $0x184] sm:$0xf]
    %v674 = vld [vmem:[#allocation8 + $0x188] sm:$0xf]
    %v675 = vld [vmem:[#allocation8 + $0x18c] sm:$0xf]
    %v676 = vld [vmem:[#allocation8 + $0x190] sm:$0xf]
    %v677 = vld [vmem:[#allocation8 + $0x194] sm:$0xf]
    %v678 = vld [vmem:[#allocation8 + $0x198] sm:$0xf]
    %v679 = vld [vmem:[#allocation8 + $0x19c] sm:$0xf]
    %v680 = vld [vmem:[#allocation8 + $0x1a0] sm:$0xf]
    %v681 = vld [vmem:[#allocation8 + $0x1a4] sm:$0xf]
    %v682 = vld [vmem:[#allocation8 + $0x1a8] sm:$0xf]
    %v683 = vld [vmem:[#allocation8 + $0x1ac] sm:$0xf]
    %v684 = vld [vmem:[#allocation8 + $0x1b0] sm:$0xf]
    %v685 = vld [vmem:[#allocation8 + $0x1b4] sm:$0xf]
    %v686 = vld [vmem:[#allocation8 + $0x1b8] sm:$0xf]
    %v687 = vld [vmem:[#allocation8 + $0x1bc] sm:$0xf]
    %v688 = vld [vmem:[#allocation8 + $0x1c0] sm:$0xf]
    %v689 = vld [vmem:[#allocation8 + $0x1c4] sm:$0xf]
    %v690 = vld [vmem:[#allocation8 + $0x1c8] sm:$0xf]
    %v691 = vld [vmem:[#allocation8 + $0x1cc] sm:$0xf]
    %v692 = vld [vmem:[#allocation8 + $0x1d0] sm:$0xf]
    %v693 = vld [vmem:[#allocation8 + $0x1d4] sm:$0xf]
    %v694 = vld [vmem:[#allocation8 + $0x1d8] sm:$0xf]
    %v695 = vld [vmem:[#allocation8 + $0x1dc] sm:$0xf]
    %v696 = vld [vmem:[#allocation8 + $0x1e0] sm:$0xf]
    %v697 = vld [vmem:[#allocation8 + $0x1e4] sm:$0xf]
    %v698 = vld [vmem:[#allocation8 + $0x1e8] sm:$0xf]
    %v699 = vld [vmem:[#allocation8 + $0x1ec] sm:$0xf]
    %v700 = vld [vmem:[#allocation8 + $0x1f0] sm:$0xf]
    %v701 = vld [vmem:[#allocation8 + $0x1f4] sm:$0xf]
    %v702 = vld [vmem:[#allocation8 + $0x1f8] sm:$0xf]
    %v703 = vld [vmem:[#allocation8 + $0x1fc] sm:$0xf]
    %v704 = vld [vmem:[%s4] sm:$0x1]
    %v706 = vlaneseq
    %v707 = vshrl.u32 %v706, 7
    %v708 = vsub.s32 0, %v707
    %v709 = vrot.slane %v704, %v708
    %v839 = vunpack.c.l.b16 %v576
    %v840 = vunpack.c.l.b16 %v577
    %v841 = vunpack.c.l.b16 %v578
    %v842 = vunpack.c.l.b16 %v579
    %v843 = vunpack.c.l.b16 %v580
    %v844 = vunpack.c.l.b16 %v581
    %v845 = vunpack.c.l.b16 %v582
    %v846 = vunpack.c.l.b16 %v583
    %v847 = vunpack.c.l.b16 %v584
    %v848 = vunpack.c.l.b16 %v585
    %v849 = vunpack.c.l.b16 %v586
    %v850 = vunpack.c.l.b16 %v587
    %v851 = vunpack.c.l.b16 %v588
    %v852 = vunpack.c.l.b16 %v589
    %v853 = vunpack.c.l.b16 %v590
    %v854 = vunpack.c.l.b16 %v591
    %v855 = vunpack.c.l.b16 %v592
    %v856 = vunpack.c.l.b16 %v593
    %v857 = vunpack.c.l.b16 %v594
    %v858 = vunpack.c.l.b16 %v595
    %v859 = vunpack.c.l.b16 %v596
    %v860 = vunpack.c.l.b16 %v597
    %v861 = vunpack.c.l.b16 %v598
    %v862 = vunpack.c.l.b16 %v599
    %v863 = vunpack.c.l.b16 %v600
    %v864 = vunpack.c.l.b16 %v601
    %v865 = vunpack.c.l.b16 %v602
    %v866 = vunpack.c.l.b16 %v603
    %v867 = vunpack.c.l.b16 %v604
    %v868 = vunpack.c.l.b16 %v605
    %v869 = vunpack.c.l.b16 %v606
    %v870 = vunpack.c.l.b16 %v607
    %v871 = vunpack.c.l.b16 %v608
    %v872 = vunpack.c.l.b16 %v609
    %v873 = vunpack.c.l.b16 %v610
    %v874 = vunpack.c.l.b16 %v611
    %v875 = vunpack.c.l.b16 %v612
    %v876 = vunpack.c.l.b16 %v613
    %v877 = vunpack.c.l.b16 %v614
    %v878 = vunpack.c.l.b16 %v615
    %v879 = vunpack.c.l.b16 %v616
    %v880 = vunpack.c.l.b16 %v617
    %v881 = vunpack.c.l.b16 %v618
    %v882 = vunpack.c.l.b16 %v619
    %v883 = vunpack.c.l.b16 %v620
    %v884 = vunpack.c.l.b16 %v621
    %v885 = vunpack.c.l.b16 %v622
    %v886 = vunpack.c.l.b16 %v623
    %v887 = vunpack.c.l.b16 %v624
    %v888 = vunpack.c.l.b16 %v625
    %v889 = vunpack.c.l.b16 %v626
    %v890 = vunpack.c.l.b16 %v627
    %v891 = vunpack.c.l.b16 %v628
    %v892 = vunpack.c.l.b16 %v629
    %v893 = vunpack.c.l.b16 %v630
    %v894 = vunpack.c.l.b16 %v631
    %v895 = vunpack.c.l.b16 %v632
    %v896 = vunpack.c.l.b16 %v633
    %v897 = vunpack.c.l.b16 %v634
    %v898 = vunpack.c.l.b16 %v635
    %v899 = vunpack.c.l.b16 %v636
    %v900 = vunpack.c.l.b16 %v637
    %v901 = vunpack.c.l.b16 %v638
    %v902 = vunpack.c.l.b16 %v639
    %v903 = vunpack.c.l.b16 %v640
    %v904 = vunpack.c.l.b16 %v641
    %v905 = vunpack.c.l.b16 %v642
    %v906 = vunpack.c.l.b16 %v643
    %v907 = vunpack.c.l.b16 %v644
    %v908 = vunpack.c.l.b16 %v645
    %v909 = vunpack.c.l.b16 %v646
    %v910 = vunpack.c.l.b16 %v647
    %v911 = vunpack.c.l.b16 %v648
    %v912 = vunpack.c.l.b16 %v649
    %v913 = vunpack.c.l.b16 %v650
    %v914 = vunpack.c.l.b16 %v651
    %v915 = vunpack.c.l.b16 %v652
    %v916 = vunpack.c.l.b16 %v653
    %v917 = vunpack.c.l.b16 %v654
    %v918 = vunpack.c.l.b16 %v655
    %v919 = vunpack.c.l.b16 %v656
    %v920 = vunpack.c.l.b16 %v657
    %v921 = vunpack.c.l.b16 %v658
    %v922 = vunpack.c.l.b16 %v659
    %v923 = vunpack.c.l.b16 %v660
    %v924 = vunpack.c.l.b16 %v661
    %v925 = vunpack.c.l.b16 %v662
    %v926 = vunpack.c.l.b16 %v663
    %v927 = vunpack.c.l.b16 %v664
    %v928 = vunpack.c.l.b16 %v665
    %v929 = vunpack.c.l.b16 %v666
    %v930 = vunpack.c.l.b16 %v667
    %v931 = vunpack.c.l.b16 %v668
    %v932 = vunpack.c.l.b16 %v669
    %v933 = vunpack.c.l.b16 %v670
    %v934 = vunpack.c.l.b16 %v671
    %v935 = vunpack.c.l.b16 %v672
    %v936 = vunpack.c.l.b16 %v673
    %v937 = vunpack.c.l.b16 %v674
    %v938 = vunpack.c.l.b16 %v675
    %v939 = vunpack.c.l.b16 %v676
    %v940 = vunpack.c.l.b16 %v677
    %v941 = vunpack.c.l.b16 %v678
    %v942 = vunpack.c.l.b16 %v679
    %v943 = vunpack.c.l.b16 %v680
    %v944 = vunpack.c.l.b16 %v681
    %v945 = vunpack.c.l.b16 %v682
    %v946 = vunpack.c.l.b16 %v683
    %v947 = vunpack.c.l.b16 %v684
    %v948 = vunpack.c.l.b16 %v685
    %v949 = vunpack.c.l.b16 %v686
    %v950 = vunpack.c.l.b16 %v687
    %v951 = vunpack.c.l.b16 %v688
    %v952 = vunpack.c.l.b16 %v689
    %v953 = vunpack.c.l.b16 %v690
    %v954 = vunpack.c.l.b16 %v691
    %v955 = vunpack.c.l.b16 %v692
    %v956 = vunpack.c.l.b16 %v693
    %v957 = vunpack.c.l.b16 %v694
    %v958 = vunpack.c.l.b16 %v695
    %v959 = vunpack.c.l.b16 %v696
    %v960 = vunpack.c.l.b16 %v697
    %v961 = vunpack.c.l.b16 %v698
    %v962 = vunpack.c.l.b16 %v699
    %v963 = vunpack.c.l.b16 %v700
    %v964 = vunpack.c.l.b16 %v701
    %v965 = vunpack.c.l.b16 %v702
    %v966 = vunpack.c.l.b16 %v703
    %v967 = vpack.c.b16 %v840, %v839
    %v968 = vpack.c.b16 %v842, %v841
    %v969 = vpack.c.b16 %v844, %v843
    %v970 = vpack.c.b16 %v846, %v845
    %v971 = vpack.c.b16 %v848, %v847
    %v972 = vpack.c.b16 %v850, %v849
    %v973 = vpack.c.b16 %v852, %v851
    %v974 = vpack.c.b16 %v854, %v853
    %v975 = vpack.c.b16 %v856, %v855
    %v976 = vpack.c.b16 %v858, %v857
    %v977 = vpack.c.b16 %v860, %v859
    %v978 = vpack.c.b16 %v862, %v861
    %v979 = vpack.c.b16 %v864, %v863
    %v980 = vpack.c.b16 %v866, %v865
    %v981 = vpack.c.b16 %v868, %v867
    %v982 = vpack.c.b16 %v870, %v869
    %v983 = vpack.c.b16 %v872, %v871
    %v984 = vpack.c.b16 %v874, %v873
    %v985 = vpack.c.b16 %v876, %v875
    %v986 = vpack.c.b16 %v878, %v877
    %v987 = vpack.c.b16 %v880, %v879
    %v988 = vpack.c.b16 %v882, %v881
    %v989 = vpack.c.b16 %v884, %v883
    %v990 = vpack.c.b16 %v886, %v885
    %v991 = vpack.c.b16 %v888, %v887
    %v992 = vpack.c.b16 %v890, %v889
    %v993 = vpack.c.b16 %v892, %v891
    %v994 = vpack.c.b16 %v894, %v893
    %v995 = vpack.c.b16 %v896, %v895
    %v996 = vpack.c.b16 %v898, %v897
    %v997 = vpack.c.b16 %v900, %v899
    %v998 = vpack.c.b16 %v902, %v901
    %v999 = vpack.c.b16 %v904, %v903
    %v1000 = vpack.c.b16 %v906, %v905
    %v1001 = vpack.c.b16 %v908, %v907
    %v1002 = vpack.c.b16 %v910, %v909
    %v1003 = vpack.c.b16 %v912, %v911
    %v1004 = vpack.c.b16 %v914, %v913
    %v1005 = vpack.c.b16 %v916, %v915
    %v1006 = vpack.c.b16 %v918, %v917
    %v1007 = vpack.c.b16 %v920, %v919
    %v1008 = vpack.c.b16 %v922, %v921
    %v1009 = vpack.c.b16 %v924, %v923
    %v1010 = vpack.c.b16 %v926, %v925
    %v1011 = vpack.c.b16 %v928, %v927
    %v1012 = vpack.c.b16 %v930, %v929
    %v1013 = vpack.c.b16 %v932, %v931
    %v1014 = vpack.c.b16 %v934, %v933
    %v1015 = vpack.c.b16 %v936, %v935
    %v1016 = vpack.c.b16 %v938, %v937
    %v1017 = vpack.c.b16 %v940, %v939
    %v1018 = vpack.c.b16 %v942, %v941
    %v1019 = vpack.c.b16 %v944, %v943
    %v1020 = vpack.c.b16 %v946, %v945
    %v1021 = vpack.c.b16 %v948, %v947
    %v1022 = vpack.c.b16 %v950, %v949
    %v1023 = vpack.c.b16 %v952, %v951
    %v1024 = vpack.c.b16 %v954, %v953
    %v1025 = vpack.c.b16 %v956, %v955
    %v1026 = vpack.c.b16 %v958, %v957
    %v1027 = vpack.c.b16 %v960, %v959
    %v1028 = vpack.c.b16 %v962, %v961
    %v1029 = vpack.c.b16 %v964, %v963
    %v1030 = vpack.c.b16 %v966, %v965
    %1095 = vmatprep.subr.bf16.mxu0 0
    %1096 = vmatpush1.bf16.msra.mxu0 %v967
    %1097 = vmatprep.subr.bf16.mxu0 0
    %1098 = vmatpush1.bf16.msra.mxu0 %v968
    %1099 = vmatprep.subr.bf16.mxu0 0
    %1100 = vmatpush1.bf16.msra.mxu0 %v969
    %1101 = vmatprep.subr.bf16.mxu0 0
    %1102 = vmatpush1.bf16.msra.mxu0 %v970
    %1103 = vmatprep.subr.bf16.mxu0 0
    %1104 = vmatpush1.bf16.msra.mxu0 %v971
    %1105 = vmatprep.subr.bf16.mxu0 0
    %1106 = vmatpush1.bf16.msra.mxu0 %v972
    %1107 = vmatprep.subr.bf16.mxu0 0
    %1108 = vmatpush1.bf16.msra.mxu0 %v973
    %1109 = vmatprep.subr.bf16.mxu0 0
    %1110 = vmatpush1.bf16.msra.mxu0 %v974
    %1111 = vmatprep.subr.bf16.mxu0 0
    %1112 = vmatpush1.bf16.msra.mxu0 %v975
    %1113 = vmatprep.subr.bf16.mxu0 0
    %1114 = vmatpush1.bf16.msra.mxu0 %v976
    %1115 = vmatprep.subr.bf16.mxu0 0
    %1116 = vmatpush1.bf16.msra.mxu0 %v977
    %1117 = vmatprep.subr.bf16.mxu0 0
    %1118 = vmatpush1.bf16.msra.mxu0 %v978
    %1119 = vmatprep.subr.bf16.mxu0 0
    %1120 = vmatpush1.bf16.msra.mxu0 %v979
    %1121 = vmatprep.subr.bf16.mxu0 0
    %1122 = vmatpush1.bf16.msra.mxu0 %v980
    %1123 = vmatprep.subr.bf16.mxu0 0
    %1124 = vmatpush1.bf16.msra.mxu0 %v981
    %1125 = vmatprep.subr.bf16.mxu0 0
    %1126 = vmatpush1.bf16.msra.mxu0 %v982
    %1127 = vmatprep.mubr.bf16.mxu0 %v569
    %1128 = vmatmul.mubr.bf16.gmra.mrb[0].mxu0 %v568
    %v1129 = vpop.f32.mrb[0].mxu0
    %v1130 = vadd.f32 %v709, %v1129
    %v1131 = vpop.f32.mrb[0].mxu0
    %v1132 = vpop.f32.mrb[0].mxu0
    %v1133 = vadd.f32 %v709, %v1132
    %v1134 = vpop.f32.mrb[0].mxu0
    %1135 = vdwg.mxu0
    %1136 = vmatprep.subr.bf16.mxu0 0
    %1137 = vmatpush1.bf16.msra.mxu0 %v983
    %1138 = vmatprep.subr.bf16.mxu0 0
    %1139 = vmatpush1.bf16.msra.mxu0 %v984
    %1140 = vmatprep.subr.bf16.mxu0 0
    %1141 = vmatpush1.bf16.msra.mxu0 %v985
    %1142 = vmatprep.subr.bf16.mxu0 0
    %1143 = vmatpush1.bf16.msra.mxu0 %v986
    %1144 = vmatprep.subr.bf16.mxu0 0
    %1145 = vmatpush1.bf16.msra.mxu0 %v987
    %1146 = vmatprep.subr.bf16.mxu0 0
    %1147 = vmatpush1.bf16.msra.mxu0 %v988
    %1148 = vmatprep.subr.bf16.mxu0 0
    %1149 = vmatpush1.bf16.msra.mxu0 %v989
    %1150 = vmatprep.subr.bf16.mxu0 0
    %1151 = vmatpush1.bf16.msra.mxu0 %v990
    %1152 = vmatprep.subr.bf16.mxu0 0
    %1153 = vmatpush1.bf16.msra.mxu0 %v991
    %1154 = vmatprep.subr.bf16.mxu0 0
    %1155 = vmatpush1.bf16.msra.mxu0 %v992
    %1156 = vmatprep.subr.bf16.mxu0 0
    %1157 = vmatpush1.bf16.msra.mxu0 %v993
    %1158 = vmatprep.subr.bf16.mxu0 0
    %1159 = vmatpush1.bf16.msra.mxu0 %v994
    %1160 = vmatprep.subr.bf16.mxu0 0
    %1161 = vmatpush1.bf16.msra.mxu0 %v995
    %1162 = vmatprep.subr.bf16.mxu0 0
    %1163 = vmatpush1.bf16.msra.mxu0 %v996
    %1164 = vmatprep.subr.bf16.mxu0 0
    %1165 = vmatpush1.bf16.msra.mxu0 %v997
    %1166 = vmatprep.subr.bf16.mxu0 0
    %1167 = vmatpush1.bf16.msra.mxu0 %v998
    %1168 = vmatprep.mubr.bf16.mxu0 %v571
    %1169 = vmatmul.mubr.bf16.gmra.mrb[0].mxu0 %v570
    %v1170 = vpop.f32.mrb[0].mxu0
    %v1171 = vadd.f32 %v1130, %v1170
    %v1172 = vpop.f32.mrb[0].mxu0
    %v1173 = vpop.f32.mrb[0].mxu0
    %v1174 = vadd.f32 %v1133, %v1173
    %v1175 = vpop.f32.mrb[0].mxu0
    %1176 = vdwg.mxu0
    %1177 = vmatprep.subr.bf16.mxu0 0
    %1178 = vmatpush1.bf16.msra.mxu0 %v999
    %1179 = vmatprep.subr.bf16.mxu0 0
    %1180 = vmatpush1.bf16.msra.mxu0 %v1000
    %1181 = vmatprep.subr.bf16.mxu0 0
    %1182 = vmatpush1.bf16.msra.mxu0 %v1001
    %1183 = vmatprep.subr.bf16.mxu0 0
    %1184 = vmatpush1.bf16.msra.mxu0 %v1002
    %1185 = vmatprep.subr.bf16.mxu0 0
    %1186 = vmatpush1.bf16.msra.mxu0 %v1003
    %1187 = vmatprep.subr.bf16.mxu0 0
    %1188 = vmatpush1.bf16.msra.mxu0 %v1004
    %1189 = vmatprep.subr.bf16.mxu0 0
    %1190 = vmatpush1.bf16.msra.mxu0 %v1005
    %1191 = vmatprep.subr.bf16.mxu0 0
    %1192 = vmatpush1.bf16.msra.mxu0 %v1006
    %1193 = vmatprep.subr.bf16.mxu0 0
    %1194 = vmatpush1.bf16.msra.mxu0 %v1007
    %1195 = vmatprep.subr.bf16.mxu0 0
    %1196 = vmatpush1.bf16.msra.mxu0 %v1008
    %1197 = vmatprep.subr.bf16.mxu0 0
    %1198 = vmatpush1.bf16.msra.mxu0 %v1009
    %1199 = vmatprep.subr.bf16.mxu0 0
    %1200 = vmatpush1.bf16.msra.mxu0 %v1010
    %1201 = vmatprep.subr.bf16.mxu0 0
    %1202 = vmatpush1.bf16.msra.mxu0 %v1011
    %1203 = vmatprep.subr.bf16.mxu0 0
    %1204 = vmatpush1.bf16.msra.mxu0 %v1012
    %1205 = vmatprep.subr.bf16.mxu0 0
    %1206 = vmatpush1.bf16.msra.mxu0 %v1013
    %1207 = vmatprep.subr.bf16.mxu0 0
    %1208 = vmatpush1.bf16.msra.mxu0 %v1014
    %1209 = vmatprep.mubr.bf16.mxu0 %v573
    %1210 = vmatmul.mubr.bf16.gmra.mrb[0].mxu0 %v572
    %v1211 = vpop.f32.mrb[0].mxu0
    %v1212 = vadd.f32 %v1171, %v1211
    %v1213 = vpop.f32.mrb[0].mxu0
    %v1214 = vpop.f32.mrb[0].mxu0
    %v1215 = vadd.f32 %v1174, %v1214
    %v1216 = vpop.f32.mrb[0].mxu0
    %1217 = vdwg.mxu0
    %1218 = vmatprep.subr.bf16.mxu0 0
    %1219 = vmatpush1.bf16.msra.mxu0 %v1015
    %1220 = vmatprep.subr.bf16.mxu0 0
    %1221 = vmatpush1.bf16.msra.mxu0 %v1016
    %1222 = vmatprep.subr.bf16.mxu0 0
    %1223 = vmatpush1.bf16.msra.mxu0 %v1017
    %1224 = vmatprep.subr.bf16.mxu0 0
    %1225 = vmatpush1.bf16.msra.mxu0 %v1018
    %1226 = vmatprep.subr.bf16.mxu0 0
    %1227 = vmatpush1.bf16.msra.mxu0 %v1019
    %1228 = vmatprep.subr.bf16.mxu0 0
    %1229 = vmatpush1.bf16.msra.mxu0 %v1020
    %1230 = vmatprep.subr.bf16.mxu0 0
    %1231 = vmatpush1.bf16.msra.mxu0 %v1021
    %1232 = vmatprep.subr.bf16.mxu0 0
    %1233 = vmatpush1.bf16.msra.mxu0 %v1022
    %1234 = vmatprep.subr.bf16.mxu0 0
    %1235 = vmatpush1.bf16.msra.mxu0 %v1023
    %1236 = vmatprep.subr.bf16.mxu0 0
    %1237 = vmatpush1.bf16.msra.mxu0 %v1024
    %1238 = vmatprep.subr.bf16.mxu0 0
    %1239 = vmatpush1.bf16.msra.mxu0 %v1025
    %1240 = vmatprep.subr.bf16.mxu0 0
    %1241 = vmatpush1.bf16.msra.mxu0 %v1026
    %1242 = vmatprep.subr.bf16.mxu0 0
    %1243 = vmatpush1.bf16.msra.mxu0 %v1027
    %1244 = vmatprep.subr.bf16.mxu0 0
    %1245 = vmatpush1.bf16.msra.mxu0 %v1028
    %1246 = vmatprep.subr.bf16.mxu0 0
    %1247 = vmatpush1.bf16.msra.mxu0 %v1029
    %1248 = vmatprep.subr.bf16.mxu0 0
    %1249 = vmatpush1.bf16.msra.mxu0 %v1030
    %1250 = vmatprep.mubr.bf16.mxu0 %v575
    %1251 = vmatmul.mubr.bf16.gmra.mrb[0].mxu0 %v574
    %v1252 = vpop.f32.mrb[0].mxu0
    %v1253 = vadd.f32 %v1212, %v1252
    %v1254 = vpop.f32.mrb[0].mxu0
    %v1255 = vpop.f32.mrb[0].mxu0
    %v1256 = vadd.f32 %v1215, %v1255
    %v1257 = vpop.f32.mrb[0].mxu0
    %1258 = vdwg.mxu0
    %v1259 = vpack.c.bf16 %v1256, %v1253
    %v1261 = vunpack.c.l.b16 %v1259
    %v1262 = vunpack.c.h.b16 %v1259
    %v1263 = vpack.c.b16 %v1261, %v1261
    %v1264 = vpack.c.b16 %v1262, %v1262
    %1267 = vst [vmem:[#allocation10] sm:$0xf] %v1263
    %1268 = vst [vmem:[#allocation10 + $0x4] sm:$0xf] %v1264
    // Predicated region
    $region38: #{tpu_custom_call.1} parent=1 // pred_check
      _
    $region39: #{tpu_custom_call.1} parent=1 // pred_check_branch
      %1270 = sbr.rel (0) target = $region41
    $region40: #{tpu_custom_call.1} parent=1 // pred_region
      %s1272 = ssub.s32 128, 128
      %1273 = vsyncadd [#allocation4], %s1272
      %s1274 = sshll.u32 [#allocation10], 4
      %s1275 = int_to_ptr.vmem [resolvable:$true] %s1274
      %1280 = dma.vmem_to_hbm [thread:$0]  %s1275, 128, %s5, [#allocation4], 64, 64, 4
    $region41: #{tpu_custom_call.1} parent=1 // pred_fallthru
      _
    // Predicated region
    $region42: #{tpu_custom_call.1} parent=1 // pred_check
      _
    $region43: #{tpu_custom_call.1} parent=1 // pred_check_branch
      %1282 = sbr.rel (0) target = $region45
    $region44: #{tpu_custom_call.1} parent=1 // pred_region
      %1283 = dma.done [#allocation4], 128
    $region45: #{tpu_custom_call.1} parent=1 // pred_fallthru
      _
    %1284 = vsyncpa [#allocation3], 1
    %1285 = vsyncpa [#allocation6], 1
    %1286 = vsyncpa [#allocation9], 1
    %1287 = vsyncpa [#allocation4], 1

</llo_original>
